<compile_context>
chip_gen: v5e
topology: v5e:2x2
jax: 0.10.0
libtpu: 0.0.40
codegen_flags: <defaults>
</compile_context>

<pallas_src>
import functools
import math

import jax
import jax.numpy as jnp
from jax.experimental import pallas as pl
from jax.experimental.pallas import tpu as pltpu


def _round_up(x, m):
    return ((x + m - 1) // m) * m


def _vmem_budget_bytes():
    """~70% of this generation's VMEM capacity (v5e/v6e 128 MiB, v7x 64 MiB)."""
    cap = 128 * 2**20
    try:
        info = pltpu.get_tpu_info()
        cap = int(getattr(info, "vmem_capacity_bytes", cap))
    except Exception:
        pass
    return max(16 * 2**20, int(0.70 * cap))


# ---------------------------------------------------------------------------
# Pallas kernel: one grid step computes K[:, l0 : l0+TL] for one L-tile.
# ---------------------------------------------------------------------------
def _dlr_kernel(w_ref, a_ref, b_ref, out_ref):
    # w_ref  : (2, Mp, 2Np)  w_ref[0] = [Wr | Wr],  w_ref[1] = [Wi | Wi]
    # a_ref  : (1, 2, 2Np)   a[0] = [c_re ; -c_im], a[1] = [-c_im ; -c_re]
    #                        with c = exp(Lambda * l0) for this tile
    # b_ref  : (2Np, TL)     [b_re ; b_im],  b = exp(Lambda * j), j in [0, TL)
    # out_ref: (Mp, TL)
    a = a_ref[0]                                              # (2, 2Np)
    # Effective per-tile weights (tiny VPU work, ~1 vreg per operand):
    #   Weff = [ Wr*c_re - Wi*c_im | -(Wr*c_im + Wi*c_re) ]
    weff = w_ref[0] * a[0:1, :] + w_ref[1] * a[1:2, :]        # (Mp, 2Np)
    # Single MXU contraction against the resident base table:
    #   K = u @ b_re - v @ b_im  ==  Weff @ [b_re ; b_im]
    out_ref[...] = jnp.dot(weff, b_ref[...],
                           preferred_element_type=jnp.float32)


# ---------------------------------------------------------------------------
# Wrapper: parameter unpacking / padding / table precompute (glue) + pallas_call.
# ---------------------------------------------------------------------------
@functools.partial(jax.jit, static_argnums=(3,), static_argnames=("tile_l",))
def dlr_kernel_forward(W, Lambda_log_neg_re, Lambda_im, L, *, tile_l=2048):
    """W: (C, H, N, 2) float32; Lambda_*: (N,) float32. Returns K: (C, H, L) float32."""
    C, H, N, _ = W.shape
    M = C * H

    lam_re = -(Lambda_log_neg_re.astype(jnp.float32) ** 2)           # (N,)
    lam_im = Lambda_im.astype(jnp.float32)                           # (N,)
    Wr = W[..., 0].reshape(M, N).astype(jnp.float32)
    Wi = W[..., 1].reshape(M, N).astype(jnp.float32)

    # --- pad M (sublanes) and N so block shapes are TPU-friendly -------------
    # Invariant: padded W columns stay exactly zero; padded Lambda = 0 makes the
    # base-table rows all-ones but they contribute nothing to K.
    Mp = _round_up(max(M, 8), 8)
    Np = _round_up(max(N, 8), 8)
    Wr = jnp.pad(Wr, ((0, Mp - M), (0, Np - N)))
    Wi = jnp.pad(Wi, ((0, Mp - M), (0, Np - N)))
    lam_re = jnp.pad(lam_re, (0, Np - N))
    lam_im = jnp.pad(lam_im, (0, Np - N))
    Np2 = 2 * Np

    # --- choose L tiling (>=2 grid steps when possible; fit per-gen VMEM) ----
    tile_l = max(128, (int(tile_l) // 128) * 128)
    L128 = _round_up(L, 128)
    if L128 <= tile_l:
        # Split short kernels into two tiles so both v7x TCs / megacore halves work.
        tile_l = _round_up(L128 // 2, 128) if L128 >= 256 else L128

    budget = _vmem_budget_bytes()

    def _need(tl):  # conservative double-buffered VMEM estimate + 1 MiB margin
        return 4 * (2 * Np2 * tl          # B table
                    + 2 * Mp * tl         # output blocks
                    + 2 * 2 * Mp * Np2    # W
                    + 2 * 2 * Np2         # per-tile phase block
                    ) + (1 << 20)

    while _need(tile_l) > budget and tile_l > 128:
        tile_l = max(128, ((tile_l // 2) // 128) * 128)

    L_pad = _round_up(L128, tile_l)
    num_tiles = L_pad // tile_l

    # --- precompute (plain JAX, once) the resident base table exp(Lambda*j) --
    j = jnp.arange(tile_l, dtype=jnp.float32)                        # (TL,)
    decay_j = jnp.exp(lam_re[:, None] * j)                           # (Np, TL)
    b_re = decay_j * jnp.cos(lam_im[:, None] * j)
    b_im = decay_j * jnp.sin(lam_im[:, None] * j)
    B = jnp.concatenate([b_re, b_im], axis=0)                        # (2Np, TL)

    # --- per-tile phase columns c = exp(Lambda * l0), range-reduced ----------
    l0 = jnp.arange(num_tiles, dtype=jnp.float32) * jnp.float32(tile_l)  # (T,)
    phase = jnp.mod(lam_im[None, :] * l0[:, None], 2.0 * jnp.pi)         # (T, Np)
    decay0 = jnp.exp(lam_re[None, :] * l0[:, None])                      # (T, Np)
    c_re = decay0 * jnp.cos(phase)
    c_im = decay0 * jnp.sin(phase)
    A = jnp.stack([jnp.concatenate([c_re, -c_im], axis=-1),
                   jnp.concatenate([-c_im, -c_re], axis=-1)], axis=1)    # (T, 2, 2Np)

    # --- duplicated-lane W layout so the kernel scale is 2 mul + 1 add -------
    Wd = jnp.stack([jnp.concatenate([Wr, Wr], axis=1),
                    jnp.concatenate([Wi, Wi], axis=1)], axis=0)          # (2, Mp, 2Np)

    vmem_limit = int(min(budget, max(32 * 2**20, 2 * _need(tile_l))))

    cost = pl.CostEstimate(
        flops=int(2 * Mp * Np2 * L_pad + 3 * Mp * Np2 * num_tiles),
        transcendentals=0,
        bytes_accessed=int(4 * (Np2 * tile_l + 2 * Mp * Np2
                                + num_tiles * 2 * Np2 + Mp * L_pad)),
    )

    out = pl.pallas_call(
        _dlr_kernel,
        out_shape=jax.ShapeDtypeStruct((Mp, L_pad), jnp.float32),
        grid=(num_tiles,),
        in_specs=[
            pl.BlockSpec((2, Mp, Np2), lambda i: (0, 0, 0)),     # W   (resident)
            pl.BlockSpec((1, 2, Np2), lambda i: (i, 0, 0)),      # A   (per-tile phase)
            pl.BlockSpec((Np2, tile_l), lambda i: (0, 0)),       # B   (resident)
        ],
        out_specs=pl.BlockSpec((Mp, tile_l), lambda i: (0, i)),
        compiler_params=pltpu.CompilerParams(
            dimension_semantics=("parallel",),
            vmem_limit_bytes=vmem_limit,
        ),
        cost_estimate=cost,
    )(Wd, A, B)

    return out[:M, :L].reshape(C, H, L)


# ---------------------------------------------------------------------------
# Deterministic parameter init mirroring DLRKernel.__init__ / .init
# (Lambda_init='omega', W_scale=1/N, version='')
# ---------------------------------------------------------------------------
def init_dlr_params(key, H, N, channels, dt_min=1e-4, dt_max=1e-1):
    k_dt, k_w = jax.random.split(key)
    u = jax.random.uniform(k_dt, (N,), dtype=jnp.float32)
    dt = jnp.exp(math.log(dt_min) + u * (math.log(dt_max) - math.log(dt_min)))
    lam_re = -0.5 * dt                                    # Re(Lambda)
    lam_im = (2.0 * jnp.pi * jnp.arange(N, dtype=jnp.float32) / N) % (2.0 * jnp.pi)
    Lambda_log_neg_re = jnp.sqrt(jnp.abs(lam_re))         # |Re|^0.5 as stored
    Lambda_im = lam_im
    W = jax.random.normal(k_w, (channels, H, N, 2), dtype=jnp.float32) * (1.0 / N)
    return W, Lambda_log_neg_re, Lambda_im


# ---------------------------------------------------------------------------
# Plain-JAX reference (matches DLRKernel.kernel + cast_kernel('real'))
# ---------------------------------------------------------------------------
def dlr_reference(W, Lambda_log_neg_re, Lambda_im, L):
    Lambda = -(Lambda_log_neg_re ** 2) + 1j * Lambda_im              # (N,)
    W_c = W[..., 0] + 1j * W[..., 1]                                 # (C, H, N)
    S = jnp.exp(Lambda[:, None] * jnp.arange(L, dtype=jnp.float32))  # (N, L)
    K = jnp.einsum("chn,nl->chl", W_c, S, precision=jax.lax.Precision.HIGHEST)
    return K.real.astype(jnp.float32)


if __name__ == "__main__":
    # Small shapes consistent with the module: channels=1, H=4 features,
    # N=64 states, kernel length L=1024 (split into two 512-wide lane tiles ->
    # 2 parallel grid steps so both v7x TensorCores get work).
    C, H, N, L = 1, 4, 64, 1024

    key = jax.random.PRNGKey(0)
    W, Lambda_log_neg_re, Lambda_im = init_dlr_params(key, H=H, N=N, channels=C)

    K = dlr_kernel_forward(W, Lambda_log_neg_re, Lambda_im, L)
    K = jax.block_until_ready(K)

    K_ref = dlr_reference(W, Lambda_log_neg_re, Lambda_im, L)
    assert K.shape == (C, H, L)
    assert jnp.allclose(K, K_ref, atol=1e-3, rtol=1e-3), "mismatch vs reference"

    # forward() also returns `state`, passed through unchanged (None here).
    state = None

    print("KERNEL_OK")
</pallas_src>

<mosaic_0001>
module attributes {stable_mosaic.version = 11 : i64} {
  func.func @_dlr_kernel(%arg0: i32, %arg1: memref<2x8x128xf32, #tpu.memory_space<vmem>>, %arg2: memref<1x2x128xf32, #tpu.memory_space<vmem>>, %arg3: memref<128x512xf32, #tpu.memory_space<vmem>>, %arg4: memref<8x512xf32, #tpu.memory_space<vmem>>) attributes {dimension_semantics = [#tpu.dimension_semantics<parallel>], iteration_bounds = array<i64: 2>, scalar_prefetch = 0 : i64, scratch_operands = 0 : i64, tpu.core_type = #tpu.core_type<tc>, window_params = [{pipeline_mode = #tpu.pipeline_mode<synchronous>, transform_indices = @transform_0, window_bounds = array<i64: 2, 8, 128>}, {transform_indices = @transform_1, window_bounds = array<i64: 1, 2, 128>}, {pipeline_mode = #tpu.pipeline_mode<synchronous>, transform_indices = @transform_2, window_bounds = array<i64: 128, 512>}, {transform_indices = @transform_3, window_bounds = array<i64: 8, 512>}]} {
    %c0 = arith.constant 0 : index
    %c0_0 = arith.constant 0 : index
    %c0_1 = arith.constant 0 : index
    %0 = vector.load %arg2[%c0, %c0_0, %c0_1] : memref<1x2x128xf32, #tpu.memory_space<vmem>>, vector<1x2x128xf32>
    %1 = vector.shape_cast %0 : vector<1x2x128xf32> to vector<2x128xf32>
    %c0_2 = arith.constant 0 : index
    %c0_3 = arith.constant 0 : index
    %c0_4 = arith.constant 0 : index
    %2 = vector.load %arg1[%c0_2, %c0_3, %c0_4] : memref<2x8x128xf32, #tpu.memory_space<vmem>>, vector<1x8x128xf32>
    %3 = vector.shape_cast %2 : vector<1x8x128xf32> to vector<8x128xf32>
    %4 = vector.extract_strided_slice %1 {offsets = [0, 0], sizes = [1, 128], strides = [1, 1]} : vector<2x128xf32> to vector<1x128xf32>
    %5 = vector.broadcast %4 : vector<1x128xf32> to vector<8x128xf32>
    %6 = arith.mulf %3, %5 : vector<8x128xf32>
    %c1 = arith.constant 1 : index
    %c0_5 = arith.constant 0 : index
    %c0_6 = arith.constant 0 : index
    %7 = vector.load %arg1[%c1, %c0_5, %c0_6] : memref<2x8x128xf32, #tpu.memory_space<vmem>>, vector<1x8x128xf32>
    %8 = vector.shape_cast %7 : vector<1x8x128xf32> to vector<8x128xf32>
    %9 = vector.extract_strided_slice %1 {offsets = [1, 0], sizes = [1, 128], strides = [1, 1]} : vector<2x128xf32> to vector<1x128xf32>
    %10 = vector.broadcast %9 : vector<1x128xf32> to vector<8x128xf32>
    %11 = arith.mulf %8, %10 : vector<8x128xf32>
    %12 = arith.addf %6, %11 : vector<8x128xf32>
    %c0_7 = arith.constant 0 : index
    %c0_8 = arith.constant 0 : index
    %13 = vector.load %arg3[%c0_7, %c0_8] : memref<128x512xf32, #tpu.memory_space<vmem>>, vector<128x512xf32>
    %cst = arith.constant dense<0.000000e+00> : vector<8x512xf32>
    %14 = tpu.matmul %12, %13, %cst {dimension_numbers = #tpu.dot_dimension_numbers<[1], [0], [0], [1], [0, 0, 1, 1], [], []>} : vector<8x128xf32>, vector<128x512xf32>, vector<8x512xf32> -> vector<8x512xf32>
    %c0_9 = arith.constant 0 : index
    %c0_10 = arith.constant 0 : index
    %15 = vector.load %arg4[%c0_9, %c0_10] : memref<8x512xf32, #tpu.memory_space<vmem>>, vector<8x512xf32>
    tpu.vector_store %arg4[%c0_9, %c0_10], %14 {strides = array<i32>} : memref<8x512xf32, #tpu.memory_space<vmem>>, vector<8x512xf32>,
    return
  }
  func.func @transform_0(%arg0: i32) -> (i32, i32, i32) {
    %c0_i32 = arith.constant 0 : i32
    %c0_i32_0 = arith.constant 0 : i32
    %c0_i32_1 = arith.constant 0 : i32
    %c0_i32_2 = arith.constant 0 : i32
    return %c0_i32, %c0_i32_0, %c0_i32_1 : i32, i32, i32
  }
  func.func @transform_1(%arg0: i32) -> (i32, i32, i32) {
    %c0_i32 = arith.constant 0 : i32
    %c0_i32_0 = arith.constant 0 : i32
    %c0_i32_1 = arith.constant 0 : i32
    return %arg0, %c0_i32, %c0_i32_0 : i32, i32, i32
  }
  func.func @transform_2(%arg0: i32) -> (i32, i32) {
    %c0_i32 = arith.constant 0 : i32
    %c0_i32_0 = arith.constant 0 : i32
    %c0_i32_1 = arith.constant 0 : i32
    return %c0_i32, %c0_i32_0 : i32, i32
  }
  func.func @transform_3(%arg0: i32) -> (i32, i32) {
    %c0_i32 = arith.constant 0 : i32
    %c0_i32_0 = arith.constant 0 : i32
    return %c0_i32, %arg0 : i32, i32
  }
}

</mosaic_0001>

<llo_original>
// kernel: dlr_kernel_forward.1
$region0: #{dlr_kernel_forward.1}
  #allocation0 [shape = 'u32[]', space=smem, size = 0x4, offset = 0x4, fixed_abs, tag = 'smem constant byte address 0x4 - core index']
  #allocation1 [shape = 'u32[72,128]{1,0:T(1,128)}', space=vmem, size = 0x9000, scoped, tag = 'internal scratch']
  %s0 = inlined_call_operand.vmem [shape: f32[2,8,128], index: 0, kind: input, shape index: {}]
  %s1 = inlined_call_operand.vmem [shape: f32[2,2,128], index: 1, kind: input, shape index: {}]
  %s2 = inlined_call_operand.vmem [shape: f32[128,512], index: 2, kind: input, shape index: {}]
  %s3 = inlined_call_operand.vmem [shape: f32[8,1024], index: 3, kind: output, shape index: {}]
  %s4 = sld [smem:[#allocation0]]
  $region45: #{dlr_kernel_forward.1} parent=0
    _
  %s6 = ssub.s32 1, %s4
  %s7 = scalar_select 0, %s6, %s4
  loop: start=0, step=1, limit=4
  $region2: #{dlr_kernel_forward.1} parent=0 // loop_pre_header
    _
  $region3: #{dlr_kernel_forward.1} parent=0 // loop_header
    %s9 = sphi 0, %s13
    %p10 = scmp.ge.s32.totalorder %s9, 4
    %s17 = sphi 0, %s17
    %s19 = sphi 0, %s17
    %s20 = sphi 0, %s19
    %s34 = sphi 0, %s20
    %s40 = sphi 0, %s42
    %s43 = sphi 0, %s40
    %s44 = sphi 0, %s43
    %s60 = sphi 0, %s44
    %s64 = sphi 0, %s64
    %s66 = sphi 0, %s64
    %s67 = sphi 0, %s66
    %s81 = sphi 0, %s67
    %s87 = sphi 0, %s89
    %s90 = sphi 0, %s87
    %s91 = sphi 0, %s90
    %s107 = sphi 0, %s91
  $region4: #{dlr_kernel_forward.1} parent=0 // loop_header_branch
    %12 = sbr.rel (%p10) target = $region8
  $region5: #{dlr_kernel_forward.1} parent=0 // loop_body
    %s14 = ssub.s32 %s9, 1
    %s15 = ssub.s32 %s9, 2
    %s16 = sadd.s32 %s9, 1
    %s18 = sadd.s32 %s17, 1
    %p21 = scmp.eq.s32.totalorder %s9, 1
    %p22 = scmp.ne.s32.totalorder %s17, %s19
    %p23 = scmp.eq.s32.totalorder %s9, 0
    %p24 = por %p22, %p23
    %p25 = scmp.ne.s32.totalorder %s17, %s19
    %p26 = scmp.eq.s32.totalorder %s14, 1
    %p27 = por %p25, %p26
    %p28 = scmp.ne.s32.totalorder %s19, %s20
    %p29 = scmp.eq.s32.totalorder %s14, 0
    %p30 = por %p28, %p29
    %p31 = scmp.ne.s32.totalorder %s19, %s20
    %p32 = scmp.eq.s32.totalorder %s15, 1
    %p33 = por %p31, %p32
    %p35 = scmp.ne.s32.totalorder %s20, %s34
    %p36 = scmp.eq.s32.totalorder %s15, 0
    %p37 = por %p35, %p36
    %s38 = ssub.s32 %s9, %s16
    %p39 = scmp.eq.s32.totalorder %s38, 0
    %s41 = sadd.s32 %s40, 1
    %s42 = scalar_select %p39, %s40, %s41
    %p45 = pneg %p39
    %p46 = scmp.eq.s32.totalorder %s9, 1
    %p47 = por %p45, %p46
    %p48 = scmp.ne.s32.totalorder %s40, %s43
    %p49 = scmp.eq.s32.totalorder %s9, 0
    %p50 = por %p48, %p49
    %p51 = scmp.ne.s32.totalorder %s40, %s43
    %p52 = scmp.eq.s32.totalorder %s14, 1
    %p53 = por %p51, %p52
    %p54 = scmp.ne.s32.totalorder %s43, %s44
    %p55 = scmp.eq.s32.totalorder %s14, 0
    %p56 = por %p54, %p55
    %p57 = scmp.ne.s32.totalorder %s43, %s44
    %p58 = scmp.eq.s32.totalorder %s15, 1
    %p59 = por %p57, %p58
    %p61 = scmp.ne.s32.totalorder %s44, %s60
    %p62 = scmp.eq.s32.totalorder %s15, 0
    %p63 = por %p61, %p62
    %s65 = sadd.s32 %s64, 1
    %p68 = scmp.eq.s32.totalorder %s9, 1
    %p69 = scmp.ne.s32.totalorder %s64, %s66
    %p70 = scmp.eq.s32.totalorder %s9, 0
    %p71 = por %p69, %p70
    %p72 = scmp.ne.s32.totalorder %s64, %s66
    %p73 = scmp.eq.s32.totalorder %s14, 1
    %p74 = por %p72, %p73
    %p75 = scmp.ne.s32.totalorder %s66, %s67
    %p76 = scmp.eq.s32.totalorder %s14, 0
    %p77 = por %p75, %p76
    %p78 = scmp.ne.s32.totalorder %s66, %s67
    %p79 = scmp.eq.s32.totalorder %s15, 1
    %p80 = por %p78, %p79
    %p82 = scmp.ne.s32.totalorder %s67, %s81
    %p83 = scmp.eq.s32.totalorder %s15, 0
    %p84 = por %p82, %p83
    %s85 = ssub.s32 %s9, %s16
    %p86 = scmp.eq.s32.totalorder %s85, 0
    %s88 = sadd.s32 %s87, 1
    %s89 = scalar_select %p86, %s87, %s88
    %p92 = pneg %p86
    %p93 = scmp.eq.s32.totalorder %s9, 1
    %p94 = por %p92, %p93
    %p95 = scmp.ne.s32.totalorder %s87, %s90
    %p96 = scmp.eq.s32.totalorder %s9, 0
    %p97 = por %p95, %p96
    %p98 = scmp.ne.s32.totalorder %s87, %s90
    %p99 = scmp.eq.s32.totalorder %s14, 1
    %p100 = por %p98, %p99
    %p101 = scmp.ne.s32.totalorder %s90, %s91
    %p102 = scmp.eq.s32.totalorder %s14, 0
    %p103 = por %p101, %p102
    %p104 = scmp.ne.s32.totalorder %s90, %s91
    %p105 = scmp.eq.s32.totalorder %s15, 1
    %p106 = por %p104, %p105
    %p108 = scmp.ne.s32.totalorder %s91, %s107
    %p109 = scmp.eq.s32.totalorder %s15, 0
    %p110 = por %p108, %p109
    %p111 = scmp.le.s32.totalorder 1, %s9
    %p112 = scmp.lt.s32.totalorder %s9, 3
    %p113 = pnand %p111, %p112
    %p114 = pneg %p113
    // Predicated region
    $region9: #{dlr_kernel_forward.1} parent=5 // pred_check
      _
    $region10: #{dlr_kernel_forward.1} parent=5 // pred_check_branch
      %116 = sbr.rel (%p113) target = $region12
    $region11: #{dlr_kernel_forward.1} parent=5 // pred_region
      %s117 = ssub.s32 %s9, 1
      // Predicated region
      $region13: #{dlr_kernel_forward.1} parent=11 // pred_check
        %p118 = pneg %p30
      $region14: #{dlr_kernel_forward.1} parent=11 // pred_check_branch
        %120 = sbr.rel (%p118) target = $region16
      $region15: #{dlr_kernel_forward.1} parent=11 // pred_region
        _
      $region16: #{dlr_kernel_forward.1} parent=11 // pred_fallthru
        _
      // Predicated region
      $region17: #{dlr_kernel_forward.1} parent=11 // pred_check
        %p121 = pneg %p77
      $region18: #{dlr_kernel_forward.1} parent=11 // pred_check_branch
        %123 = sbr.rel (%p121) target = $region20
      $region19: #{dlr_kernel_forward.1} parent=11 // pred_region
        _
      $region20: #{dlr_kernel_forward.1} parent=11 // pred_fallthru
        _
    $region12: #{dlr_kernel_forward.1} parent=5 // pred_fallthru
      _
    %p124 = scmp.lt.s32.totalorder %s9, 2
    // Predicated region
    $region21: #{dlr_kernel_forward.1} parent=5 // pred_check
      %p125 = pneg %p124
    $region22: #{dlr_kernel_forward.1} parent=5 // pred_check_branch
      %127 = sbr.rel (%p125) target = $region24
    $region23: #{dlr_kernel_forward.1} parent=5 // pred_region
      // Predicated region
      $region25: #{dlr_kernel_forward.1} parent=23 // pred_check
        %p128 = pneg %p50
      $region26: #{dlr_kernel_forward.1} parent=23 // pred_check_branch
        %130 = sbr.rel (%p128) target = $region28
      $region27: #{dlr_kernel_forward.1} parent=23 // pred_region
        %p131 = scmp.lt.s32.totalorder %s9, 1
        %s132 = scalar_select %p131, %s9, 1
        %s133 = smul.addr %s132, 2
        %s134 = scalar_lea.vmem %s1, %s133
      $region28: #{dlr_kernel_forward.1} parent=23 // pred_fallthru
        _
    $region24: #{dlr_kernel_forward.1} parent=5 // pred_fallthru
      _
    %p135 = scmp.le.s32.totalorder 1, %s9
    %p136 = scmp.lt.s32.totalorder %s9, 3
    %p137 = pnand %p135, %p136
    %p138 = pneg %p137
    // Predicated region
    $region29: #{dlr_kernel_forward.1} parent=5 // pred_check
      _
    $region30: #{dlr_kernel_forward.1} parent=5 // pred_check_branch
      %140 = sbr.rel (%p137) target = $region32
    $region31: #{dlr_kernel_forward.1} parent=5 // pred_region
      %s141 = ssub.s32 %s9, 1
      %p142 = pneg %p30
      %p143 = pneg %p27
      %p144 = scmp.lt.s32.totalorder %s14, 1
      %s145 = scalar_select %p144, %s14, 1
      %s146 = smul.addr %s145, 2
      %s147 = scalar_lea.vmem %s1, %s146
      %p148 = pneg %p56
      %p149 = pneg %p53
      %p150 = pneg %p77
      %p151 = pneg %p74
      %p152 = pneg %p103
      %p153 = pneg %p100
      %s154 = smul.u32 4, %s14
      %p155 = scmp.lt.s32.totalorder %s154, 7
      %s156 = scalar_select %p155, %s154, 7
      %s157 = smul.addr %s156, 8
      %s158 = scalar_lea.vmem %s3, %s157
      %p159 = scmp.lt.s32.totalorder %s14, 1
      %s160 = scalar_select %p159, %s14, 1
      %s161 = smul.addr %s160, 2
      %s162 = scalar_lea.vmem %s1, %s161
      %s163 = smul.u32 4, %s14
      %p164 = scmp.lt.s32.totalorder %s163, 7
      %s165 = scalar_select %p164, %s163, 7
      %s166 = smul.addr %s165, 8
      %s167 = scalar_lea.vmem %s3, %s166
      %s168 = smul.u32 4, %s14
      %v169 = vld [vmem:[%s162] sm:$0x3]
      %v170 = vld [vmem:[%s0] sm:$0xff]
      %v171 = vperm.slane %v169, 0
      %v172 = vmul.f32 %v170, %v171
      %s173 = scalar_lea.vmem %s0, 8
      %v174 = vld [vmem:[%s173] sm:$0xff]
      %v175 = vperm.slane %v169, 1
      %v176 = vmul.f32 %v174, %v175
      %v177 = vadd.f32 %v172, %v176
      %v178 = vld [vmem:[%s2] sm:$0xff]
      %v179 = vld [vmem:[%s2 + $0x8] sm:$0xff]
      %v180 = vld [vmem:[%s2 + $0x10] sm:$0xff]
      %v181 = vld [vmem:[%s2 + $0x18] sm:$0xff]
      %v182 = vld [vmem:[%s2 + $0x20] sm:$0xff]
      %v183 = vld [vmem:[%s2 + $0x28] sm:$0xff]
      %v184 = vld [vmem:[%s2 + $0x30] sm:$0xff]
      %v185 = vld [vmem:[%s2 + $0x38] sm:$0xff]
      %v186 = vld [vmem:[%s2 + $0x40] sm:$0xff]
      %v187 = vld [vmem:[%s2 + $0x48] sm:$0xff]
      %v188 = vld [vmem:[%s2 + $0x50] sm:$0xff]
      %v189 = vld [vmem:[%s2 + $0x58] sm:$0xff]
      %v190 = vld [vmem:[%s2 + $0x60] sm:$0xff]
      %v191 = vld [vmem:[%s2 + $0x68] sm:$0xff]
      %v192 = vld [vmem:[%s2 + $0x70] sm:$0xff]
      %v193 = vld [vmem:[%s2 + $0x78] sm:$0xff]
      %v194 = vld [vmem:[%s2 + $0x80] sm:$0xff]
      %v195 = vld [vmem:[%s2 + $0x88] sm:$0xff]
      %v196 = vld [vmem:[%s2 + $0x90] sm:$0xff]
      %v197 = vld [vmem:[%s2 + $0x98] sm:$0xff]
      %v198 = vld [vmem:[%s2 + $0xa0] sm:$0xff]
      %v199 = vld [vmem:[%s2 + $0xa8] sm:$0xff]
      %v200 = vld [vmem:[%s2 + $0xb0] sm:$0xff]
      %v201 = vld [vmem:[%s2 + $0xb8] sm:$0xff]
      %v202 = vld [vmem:[%s2 + $0xc0] sm:$0xff]
      %v203 = vld [vmem:[%s2 + $0xc8] sm:$0xff]
      %v204 = vld [vmem:[%s2 + $0xd0] sm:$0xff]
      %v205 = vld [vmem:[%s2 + $0xd8] sm:$0xff]
      %v206 = vld [vmem:[%s2 + $0xe0] sm:$0xff]
      %v207 = vld [vmem:[%s2 + $0xe8] sm:$0xff]
      %v208 = vld [vmem:[%s2 + $0xf0] sm:$0xff]
      %v209 = vld [vmem:[%s2 + $0xf8] sm:$0xff]
      %v210 = vld [vmem:[%s2 + $0x100] sm:$0xff]
      %v211 = vld [vmem:[%s2 + $0x108] sm:$0xff]
      %v212 = vld [vmem:[%s2 + $0x110] sm:$0xff]
      %v213 = vld [vmem:[%s2 + $0x118] sm:$0xff]
      %v214 = vld [vmem:[%s2 + $0x120] sm:$0xff]
      %v215 = vld [vmem:[%s2 + $0x128] sm:$0xff]
      %v216 = vld [vmem:[%s2 + $0x130] sm:$0xff]
      %v217 = vld [vmem:[%s2 + $0x138] sm:$0xff]
      %v218 = vld [vmem:[%s2 + $0x140] sm:$0xff]
      %v219 = vld [vmem:[%s2 + $0x148] sm:$0xff]
      %v220 = vld [vmem:[%s2 + $0x150] sm:$0xff]
      %v221 = vld [vmem:[%s2 + $0x158] sm:$0xff]
      %v222 = vld [vmem:[%s2 + $0x160] sm:$0xff]
      %v223 = vld [vmem:[%s2 + $0x168] sm:$0xff]
      %v224 = vld [vmem:[%s2 + $0x170] sm:$0xff]
      %v225 = vld [vmem:[%s2 + $0x178] sm:$0xff]
      %v226 = vld [vmem:[%s2 + $0x180] sm:$0xff]
      %v227 = vld [vmem:[%s2 + $0x188] sm:$0xff]
      %v228 = vld [vmem:[%s2 + $0x190] sm:$0xff]
      %v229 = vld [vmem:[%s2 + $0x198] sm:$0xff]
      %v230 = vld [vmem:[%s2 + $0x1a0] sm:$0xff]
      %v231 = vld [vmem:[%s2 + $0x1a8] sm:$0xff]
      %v232 = vld [vmem:[%s2 + $0x1b0] sm:$0xff]
      %v233 = vld [vmem:[%s2 + $0x1b8] sm:$0xff]
      %v234 = vld [vmem:[%s2 + $0x1c0] sm:$0xff]
      %v235 = vld [vmem:[%s2 + $0x1c8] sm:$0xff]
      %v236 = vld [vmem:[%s2 + $0x1d0] sm:$0xff]
      %v237 = vld [vmem:[%s2 + $0x1d8] sm:$0xff]
      %v238 = vld [vmem:[%s2 + $0x1e0] sm:$0xff]
      %v239 = vld [vmem:[%s2 + $0x1e8] sm:$0xff]
      %v240 = vld [vmem:[%s2 + $0x1f0] sm:$0xff]
      %v241 = vld [vmem:[%s2 + $0x1f8] sm:$0xff]
      %242 = vmatpush.msra.mxu0 %v238
      %243 = vmatpush.msra.mxu0 %v234
      %244 = vmatpush.msra.mxu0 %v230
      %245 = vmatpush.msra.mxu0 %v226
      %246 = vmatpush.msra.mxu0 %v222
      %247 = vmatpush.msra.mxu0 %v218
      %248 = vmatpush.msra.mxu0 %v214
      %249 = vmatpush.msra.mxu0 %v210
      %250 = vmatpush.msra.mxu0 %v206
      %251 = vmatpush.msra.mxu0 %v202
      %252 = vmatpush.msra.mxu0 %v198
      %253 = vmatpush.msra.mxu0 %v194
      %254 = vmatpush.msra.mxu0 %v190
      %255 = vmatpush.msra.mxu0 %v186
      %256 = vmatpush.msra.mxu0 %v182
      %257 = vmatpush.msra.mxu0 %v178
      %258 = vmatmul.f32.gmra.mxu0 %v177
      %v259 = vpop.f32.mrf.mxu0
      %v260 = vadd.f32 0.0, %v259
      %261 = vdwg.mxu0
      %262 = vmatpush.msra.mxu0 %v239
      %263 = vmatpush.msra.mxu0 %v235
      %264 = vmatpush.msra.mxu0 %v231
      %265 = vmatpush.msra.mxu0 %v227
      %266 = vmatpush.msra.mxu0 %v223
      %267 = vmatpush.msra.mxu0 %v219
      %268 = vmatpush.msra.mxu0 %v215
      %269 = vmatpush.msra.mxu0 %v211
      %270 = vmatpush.msra.mxu0 %v207
      %271 = vmatpush.msra.mxu0 %v203
      %272 = vmatpush.msra.mxu0 %v199
      %273 = vmatpush.msra.mxu0 %v195
      %274 = vmatpush.msra.mxu0 %v191
      %275 = vmatpush.msra.mxu0 %v187
      %276 = vmatpush.msra.mxu0 %v183
      %277 = vmatpush.msra.mxu0 %v179
      %278 = vmatmul.f32.gmra.mxu0 %v177
      %v279 = vpop.f32.mrf.mxu0
      %v280 = vadd.f32 0.0, %v279
      %281 = vdwg.mxu0
      %282 = vmatpush.msra.mxu0 %v240
      %283 = vmatpush.msra.mxu0 %v236
      %284 = vmatpush.msra.mxu0 %v232
      %285 = vmatpush.msra.mxu0 %v228
      %286 = vmatpush.msra.mxu0 %v224
      %287 = vmatpush.msra.mxu0 %v220
      %288 = vmatpush.msra.mxu0 %v216
      %289 = vmatpush.msra.mxu0 %v212
      %290 = vmatpush.msra.mxu0 %v208
      %291 = vmatpush.msra.mxu0 %v204
      %292 = vmatpush.msra.mxu0 %v200
      %293 = vmatpush.msra.mxu0 %v196
      %294 = vmatpush.msra.mxu0 %v192
      %295 = vmatpush.msra.mxu0 %v188
      %296 = vmatpush.msra.mxu0 %v184
      %297 = vmatpush.msra.mxu0 %v180
      %298 = vmatmul.f32.gmra.mxu0 %v177
      %v299 = vpop.f32.mrf.mxu0
      %v300 = vadd.f32 0.0, %v299
      %301 = vdwg.mxu0
      %302 = vmatpush.msra.mxu0 %v241
      %303 = vmatpush.msra.mxu0 %v237
      %304 = vmatpush.msra.mxu0 %v233
      %305 = vmatpush.msra.mxu0 %v229
      %306 = vmatpush.msra.mxu0 %v225
      %307 = vmatpush.msra.mxu0 %v221
      %308 = vmatpush.msra.mxu0 %v217
      %309 = vmatpush.msra.mxu0 %v213
      %310 = vmatpush.msra.mxu0 %v209
      %311 = vmatpush.msra.mxu0 %v205
      %312 = vmatpush.msra.mxu0 %v201
      %313 = vmatpush.msra.mxu0 %v197
      %314 = vmatpush.msra.mxu0 %v193
      %315 = vmatpush.msra.mxu0 %v189
      %316 = vmatpush.msra.mxu0 %v185
      %317 = vmatpush.msra.mxu0 %v181
      %318 = vmatmul.f32.gmra.mxu0 %v177
      %v319 = vpop.f32.mrf.mxu0
      %v320 = vadd.f32 0.0, %v319
      %321 = vdwg.mxu0
      %322 = vst [vmem:[%s167] sm:$0xff] %v260
      %323 = vst [vmem:[%s167 + $0x8] sm:$0xff] %v280
      %324 = vst [vmem:[%s167 + $0x10] sm:$0xff] %v300
      %325 = vst [vmem:[%s167 + $0x18] sm:$0xff] %v320
      %s326 = smul.u32 4, %s14
      %p327 = scmp.lt.s32.totalorder %s326, 7
      %s328 = scalar_select %p327, %s326, 7
      %s329 = smul.addr %s328, 8
      %s330 = scalar_lea.vmem %s3, %s329
      // Predicated region
      $region33: #{dlr_kernel_forward.1} parent=31 // pred_check
        %p331 = pneg %p100
      $region34: #{dlr_kernel_forward.1} parent=31 // pred_check_branch
        %333 = sbr.rel (%p331) target = $region36
      $region35: #{dlr_kernel_forward.1} parent=31 // pred_region
        %s334 = smul.u32 4, %s14
      $region36: #{dlr_kernel_forward.1} parent=31 // pred_fallthru
        _
    $region32: #{dlr_kernel_forward.1} parent=5 // pred_fallthru
      _
    %p335 = scmp.le.s32.totalorder 2, %s9
    // Predicated region
    $region37: #{dlr_kernel_forward.1} parent=5 // pred_check
      %p336 = pneg %p335
    $region38: #{dlr_kernel_forward.1} parent=5 // pred_check_branch
      %338 = sbr.rel (%p336) target = $region40
    $region39: #{dlr_kernel_forward.1} parent=5 // pred_region
      %s339 = ssub.s32 %s9, 2
      // Predicated region
      $region41: #{dlr_kernel_forward.1} parent=39 // pred_check
        %p340 = pneg %p106
      $region42: #{dlr_kernel_forward.1} parent=39 // pred_check_branch
        %342 = sbr.rel (%p340) target = $region44
      $region43: #{dlr_kernel_forward.1} parent=39 // pred_region
        %s343 = smul.u32 4, %s15
        %p344 = scmp.lt.s32.totalorder %s343, 7
        %s345 = scalar_select %p344, %s343, 7
        %s346 = smul.addr %s345, 8
        %s347 = scalar_lea.vmem %s3, %s346
      $region44: #{dlr_kernel_forward.1} parent=39 // pred_fallthru
        _
    $region40: #{dlr_kernel_forward.1} parent=5 // pred_fallthru
      _
  $region6: #{dlr_kernel_forward.1} parent=0 // loop_footer
    %s13 = sadd.s32 1, %s9
  $region7: #{dlr_kernel_forward.1} parent=0 // loop_footer_branch
    %8 = sbr.rel target = $region3
  $region8: #{dlr_kernel_forward.1} parent=0 // loop_exit
    _

</llo_original>
